<compile_context>
chip_gen: v7x
topology: tpu7x:2x2x1
jax: 0.10.0
libtpu: 0.0.40
codegen_flags: <defaults>
</compile_context>

<pallas_src>
import functools

import jax
import jax.numpy as jnp
from jax import lax
from jax.experimental import pallas as pl
from jax.experimental.pallas import tpu as pltpu

LN_EPS = 1e-5


def _layernorm_fused(h, gamma, beta):
    # One-pass LayerNorm: mean and mean-of-squares are independent lane
    # reductions (overlap on the XLU); gamma folded into the rsqrt scale.
    # TODO(synk): if bundle dumps at large TB show the XLU saturating, compute
    # the row-sums of [h, h*h] via one MXU matmul with a ones vector instead.
    mu = jnp.mean(h, axis=-1, keepdims=True)
    ms = jnp.mean(h * h, axis=-1, keepdims=True)
    scale = lax.rsqrt(ms - mu * mu + LN_EPS) * gamma
    return (h - mu) * scale + beta


def critic_kernel(tb,
                  b_true_ref,                     # (1,) int32 scalar prefetch (SMEM)
                  x1_ref, x2_ref, x3_ref,         # f32 activation tiles (pipelined)
                  w1_ref, w2_ref, w3_ref,         # bf16 gate weights (VMEM-resident)
                  a1_ref, a2_ref,                 # bf16 MLP weights (VMEM-resident)
                  p_ref,                          # (8, wmax) packed small params (f32)
                  out_ref):                       # (8, h2) per-tile partial sums
    bf16 = jnp.bfloat16
    f32 = jnp.float32

    # --- fused gate: x1@W1 + x2@W2 + x3@W3, bf16 operands / f32 accumulation ---
    z = jnp.dot(x2_ref[...].astype(bf16), w2_ref[...], preferred_element_type=f32)
    z = z + jnp.dot(x1_ref[...].astype(bf16), w1_ref[...], preferred_element_type=f32)
    z = z + jnp.dot(x3_ref[...].astype(bf16), w3_ref[...], preferred_element_type=f32)

    p = p_ref[...]                                # small-parameter slab (8, wmax)
    in_dim = z.shape[-1]                          # 128

    s = jnp.clip(jax.nn.sigmoid(z + p[0:1, :in_dim]), 1e-5, 1.0 - 1e-5)

    # --- MLP layer 1: Linear(128 -> 256) + LayerNorm + ReLU ---
    h = jnp.dot(s.astype(bf16), a1_ref[...], preferred_element_type=f32)
    h1 = h.shape[-1]
    h = h + p[1:2, :h1]
    h = jnp.maximum(_layernorm_fused(h, p[2:3, :h1], p[3:4, :h1]), 0.0)

    # --- MLP layer 2: Linear(256 -> 128) + LayerNorm + ReLU ---
    h = jnp.dot(h.astype(bf16), a2_ref[...], preferred_element_type=f32)
    h2 = h.shape[-1]
    h = h + p[4:5, :h2]
    h = jnp.maximum(_layernorm_fused(h, p[5:6, :h2], p[6:7, :h2]), 0.0)

    # --- final Linear(128 -> 1) as elementwise mul + sublane-group partial sum.
    # Rows beyond the true batch (partial edge block) hold undefined data:
    # mask with a NaN-safe select, never a multiply.
    row = pl.program_id(0) * tb + lax.broadcasted_iota(jnp.int32, (tb, 1), 0)
    weighted = jnp.where(row < b_true_ref[0], h * p[7:8, :h2], 0.0)
    # Lane-dense (8, h2) partial-sum slab per tile; mean + c3 finished in wrapper.
    out_ref[...] = jnp.sum(weighted.reshape(tb // 8, 8, h2), axis=0)


def _pick_tile(batch, tile_b):
    """Multiple-of-8 batch tile <= tile_b, aiming for >=2 (even) grid steps."""
    tile_b = max(8, (tile_b // 8) * 8)
    if batch <= 8:
        return 8
    n_pairs = pl.cdiv(batch, 2 * tile_b)           # target 2*n_pairs grid steps
    tb = ((pl.cdiv(batch, 2 * n_pairs) + 7) // 8) * 8
    return min(tb, tile_b)


def critic_forward(x1, x2, x3, params, *, tile_b=1024):
    B = x1.shape[0]
    emb = x1.shape[1]                   # embedding_length (W1 rows)
    nt = x3.shape[1]                    # num_teacher (W3 rows)
    in_dim = params["A1"].shape[0]      # 128 (gate output width / MLP input)
    h1 = params["A1"].shape[1]          # 256
    h2 = params["A2"].shape[1]          # 128

    tb = _pick_tile(B, tile_b)
    num_tiles = pl.cdiv(B, tb)

    # bf16 matmul operands for the (tiny) weights; activations stay f32 in HBM
    # and are cast in-kernel (no extra HBM materialization).
    w1 = params["W1"].astype(jnp.bfloat16)
    w2 = params["W2"].astype(jnp.bfloat16)
    w3 = params["W3"].astype(jnp.bfloat16)
    a1 = params["A1"].astype(jnp.bfloat16)
    a2 = params["A2"].astype(jnp.bfloat16)

    # Pack the eight small (1, h) parameter rows into one (8, wmax) f32 slab.
    wmax = max(in_dim, h1, h2)
    pad = lambda v: jnp.pad(v, ((0, 0), (0, wmax - v.shape[1])))
    pslab = jnp.concatenate(
        [pad(params["b"]), pad(params["c1"]), pad(params["g1"]), pad(params["be1"]),
         pad(params["c2"]), pad(params["g2"]), pad(params["be2"]), pad(params["A3"])],
        axis=0)

    b_true = jnp.array([B], dtype=jnp.int32)        # runtime scalar (SMEM prefetch)

    # Block index (0, 0) every step -> weight stays VMEM-resident across tiles.
    resident = lambda shape: pl.BlockSpec(shape, lambda i, b: (0, 0))

    out = pl.pallas_call(
        functools.partial(critic_kernel, tb),
        out_shape=jax.ShapeDtypeStruct((num_tiles * 8, h2), jnp.float32),
        grid_spec=pltpu.PrefetchScalarGridSpec(
            num_scalar_prefetch=1,
            grid=(num_tiles,),
            in_specs=[
                pl.BlockSpec((tb, emb), lambda i, b: (i, 0)),     # x1 tile
                pl.BlockSpec((tb, in_dim), lambda i, b: (i, 0)),  # x2 tile (dominant)
                pl.BlockSpec((tb, nt), lambda i, b: (i, 0)),      # x3 tile
                resident((emb, in_dim)),                          # W1
                resident((in_dim, in_dim)),                       # W2
                resident((nt, in_dim)),                           # W3
                resident((in_dim, h1)),                           # A1
                resident((h1, h2)),                               # A2
                resident((8, wmax)),                              # packed b/c/gamma/beta/A3
            ],
            out_specs=pl.BlockSpec((8, h2), lambda i, b: (i, 0)),
        ),
        compiler_params=pltpu.CompilerParams(
            dimension_semantics=("parallel",)),
    )(b_true, x1, x2, x3, w1, w2, w3, a1, a2, pslab)

    # Epilogue in JAX: global mean over the TRUE batch + final bias c3.
    return jnp.sum(out) / B + params["c3"][0, 0]


def init_params(key, embedding_length, num_teacher, input_dim=128,
                hidden_dim=(256, 128), output_dim=1):
    keys = jax.random.split(key, 10)
    u = lambda k, shape, lo, hi: jax.random.uniform(
        k, shape, dtype=jnp.float32, minval=lo, maxval=hi)

    p = {
        # gate parameters: uniform(-0.5, 0.5) as in the PyTorch __init__
        "W1": u(keys[0], (embedding_length, 128), -0.5, 0.5),
        "W2": u(keys[1], (128, 128), -0.5, 0.5),
        "W3": u(keys[2], (num_teacher, 128), -0.5, 0.5),
        "b":  u(keys[3], (1, 128), -0.5, 0.5),
    }
    h1, h2 = hidden_dim
    bnd1 = 1.0 / (input_dim ** 0.5)
    bnd2 = 1.0 / (h1 ** 0.5)
    bnd3 = 1.0 / (h2 ** 0.5)
    p["A1"] = u(keys[4], (input_dim, h1), -bnd1, bnd1)   # stored (in, out)
    p["c1"] = u(keys[5], (1, h1), -bnd1, bnd1)
    p["g1"] = jnp.ones((1, h1), jnp.float32)             # LayerNorm gamma
    p["be1"] = jnp.zeros((1, h1), jnp.float32)           # LayerNorm beta
    p["A2"] = u(keys[6], (h1, h2), -bnd2, bnd2)
    p["c2"] = u(keys[7], (1, h2), -bnd2, bnd2)
    p["g2"] = jnp.ones((1, h2), jnp.float32)
    p["be2"] = jnp.zeros((1, h2), jnp.float32)
    p["A3"] = u(keys[8], (output_dim, h2), -bnd3, bnd3)  # (1, 128), used as row vector
    p["c3"] = u(keys[9], (1, 1), -bnd3, bnd3)
    return p


def critic_reference(x1, x2, x3, p):
    # Pure-JAX reference emulating the kernel's numerics (bf16 matmul operands,
    # f32 accumulation / elementwise), matching the PyTorch forward semantics.
    bf = lambda t: t.astype(jnp.bfloat16)
    z = (jnp.dot(bf(x1), bf(p["W1"]), preferred_element_type=jnp.float32)
         + jnp.dot(bf(x2), bf(p["W2"]), preferred_element_type=jnp.float32)
         + jnp.dot(bf(x3), bf(p["W3"]), preferred_element_type=jnp.float32))
    s = jnp.clip(jax.nn.sigmoid(z + p["b"]), 1e-5, 1.0 - 1e-5)
    h = jnp.dot(bf(s), bf(p["A1"]), preferred_element_type=jnp.float32) + p["c1"]
    h = jnp.maximum(_layernorm_fused(h, p["g1"], p["be1"]), 0.0)
    h = jnp.dot(bf(h), bf(p["A2"]), preferred_element_type=jnp.float32) + p["c2"]
    h = jnp.maximum(_layernorm_fused(h, p["g2"], p["be2"]), 0.0)
    out = h @ p["A3"].T + p["c3"]
    return jnp.mean(out)


if __name__ == "__main__":
    EMB = 32              # embedding_length
    NUM_TEACHER = 4

    key = jax.random.PRNGKey(0)
    k_p, k1, k2, k3 = jax.random.split(key, 4)
    params = init_params(k_p, embedding_length=EMB, num_teacher=NUM_TEACHER)

    # Small-batch check (single tile).
    B = 8
    x1 = jax.random.normal(k1, (B, EMB), jnp.float32)
    x2 = jax.random.normal(k2, (B, 128), jnp.float32)
    x3 = jax.random.normal(k3, (B, NUM_TEACHER), jnp.float32)

    out = jax.block_until_ready(critic_forward(x1, x2, x3, params))
    ref = jax.block_until_ready(critic_reference(x1, x2, x3, params))
    assert jnp.allclose(out, ref, rtol=2e-3, atol=2e-3), (out, ref)

    # Multi-tile check (batch grid, resident weights, partial edge block + masking).
    B2 = 100
    y1 = jax.random.normal(jax.random.PRNGKey(1), (B2, EMB), jnp.float32)
    y2 = jax.random.normal(jax.random.PRNGKey(2), (B2, 128), jnp.float32)
    y3 = jax.random.normal(jax.random.PRNGKey(3), (B2, NUM_TEACHER), jnp.float32)
    out2 = jax.block_until_ready(critic_forward(y1, y2, y3, params, tile_b=48))
    ref2 = jax.block_until_ready(critic_reference(y1, y2, y3, params))
    assert jnp.allclose(out2, ref2, rtol=2e-3, atol=2e-3), (out2, ref2)

    print("KERNEL_OK")
</pallas_src>

<mosaic_0001>
module attributes {stable_mosaic.version = 11 : i64} {
  func.func @critic_kernel(%arg0: i32, %arg1: memref<1xi32, #tpu.memory_space<smem>>, %arg2: memref<8x32xf32, #tpu.memory_space<vmem>>, %arg3: memref<8x128xf32, #tpu.memory_space<vmem>>, %arg4: memref<8x4xf32, #tpu.memory_space<vmem>>, %arg5: memref<32x128xbf16, #tpu.memory_space<vmem>>, %arg6: memref<128x128xbf16, #tpu.memory_space<vmem>>, %arg7: memref<4x128xbf16, #tpu.memory_space<vmem>>, %arg8: memref<128x256xbf16, #tpu.memory_space<vmem>>, %arg9: memref<256x128xbf16, #tpu.memory_space<vmem>>, %arg10: memref<8x256xf32, #tpu.memory_space<vmem>>, %arg11: memref<8x128xf32, #tpu.memory_space<vmem>>) attributes {dimension_semantics = [#tpu.dimension_semantics<parallel>], iteration_bounds = array<i64: 1>, scalar_prefetch = 1 : i64, scratch_operands = 0 : i64, tpu.core_type = #tpu.core_type<tc>, window_params = [{transform_indices = @transform_0, window_bounds = array<i64: 8, 32>}, {transform_indices = @transform_1, window_bounds = array<i64: 8, 128>}, {transform_indices = @transform_2, window_bounds = array<i64: 8, 4>}, {pipeline_mode = #tpu.pipeline_mode<synchronous>, transform_indices = @transform_3, window_bounds = array<i64: 32, 128>}, {pipeline_mode = #tpu.pipeline_mode<synchronous>, transform_indices = @transform_4, window_bounds = array<i64: 128, 128>}, {pipeline_mode = #tpu.pipeline_mode<synchronous>, transform_indices = @transform_5, window_bounds = array<i64: 4, 128>}, {pipeline_mode = #tpu.pipeline_mode<synchronous>, transform_indices = @transform_6, window_bounds = array<i64: 128, 256>}, {pipeline_mode = #tpu.pipeline_mode<synchronous>, transform_indices = @transform_7, window_bounds = array<i64: 256, 128>}, {pipeline_mode = #tpu.pipeline_mode<synchronous>, transform_indices = @transform_8, window_bounds = array<i64: 8, 256>}, {transform_indices = @transform_9, window_bounds = array<i64: 8, 128>}]} {
    %c0 = arith.constant 0 : index
    %c0_0 = arith.constant 0 : index
    %0 = vector.load %arg3[%c0, %c0_0] : memref<8x128xf32, #tpu.memory_space<vmem>>, vector<8x128xf32>
    %1 = arith.truncf %0 : vector<8x128xf32> to vector<8x128xbf16>
    %c0_1 = arith.constant 0 : index
    %c0_2 = arith.constant 0 : index
    %2 = vector.load %arg6[%c0_1, %c0_2] : memref<128x128xbf16, #tpu.memory_space<vmem>>, vector<128x128xbf16>
    %cst = arith.constant dense<0.000000e+00> : vector<8x128xf32>
    %3 = tpu.matmul %1, %2, %cst {dimension_numbers = #tpu.dot_dimension_numbers<[1], [0], [0], [1], [0, 0, 1, 1], [], []>} : vector<8x128xbf16>, vector<128x128xbf16>, vector<8x128xf32> -> vector<8x128xf32>
    %c0_3 = arith.constant 0 : index
    %c0_4 = arith.constant 0 : index
    %4 = vector.load %arg2[%c0_3, %c0_4] : memref<8x32xf32, #tpu.memory_space<vmem>>, vector<8x32xf32>
    %5 = arith.truncf %4 : vector<8x32xf32> to vector<8x32xbf16>
    %c0_5 = arith.constant 0 : index
    %c0_6 = arith.constant 0 : index
    %6 = vector.load %arg5[%c0_5, %c0_6] : memref<32x128xbf16, #tpu.memory_space<vmem>>, vector<32x128xbf16>
    %cst_7 = arith.constant dense<0.000000e+00> : vector<8x128xf32>
    %7 = tpu.matmul %5, %6, %cst_7 {dimension_numbers = #tpu.dot_dimension_numbers<[1], [0], [0], [1], [0, 0, 1, 1], [], []>} : vector<8x32xbf16>, vector<32x128xbf16>, vector<8x128xf32> -> vector<8x128xf32>
    %8 = arith.addf %3, %7 : vector<8x128xf32>
    %c0_8 = arith.constant 0 : index
    %c0_9 = arith.constant 0 : index
    %9 = vector.load %arg4[%c0_8, %c0_9] : memref<8x4xf32, #tpu.memory_space<vmem>>, vector<8x4xf32>
    %10 = arith.truncf %9 : vector<8x4xf32> to vector<8x4xbf16>
    %c0_10 = arith.constant 0 : index
    %c0_11 = arith.constant 0 : index
    %11 = vector.load %arg7[%c0_10, %c0_11] : memref<4x128xbf16, #tpu.memory_space<vmem>>, vector<4x128xbf16>
    %cst_12 = arith.constant dense<0.000000e+00> : vector<8x128xf32>
    %12 = tpu.matmul %10, %11, %cst_12 {dimension_numbers = #tpu.dot_dimension_numbers<[1], [0], [0], [1], [0, 0, 1, 1], [], []>} : vector<8x4xbf16>, vector<4x128xbf16>, vector<8x128xf32> -> vector<8x128xf32>
    %13 = arith.addf %8, %12 : vector<8x128xf32>
    %c0_13 = arith.constant 0 : index
    %c0_14 = arith.constant 0 : index
    %14 = vector.load %arg10[%c0_13, %c0_14] : memref<8x256xf32, #tpu.memory_space<vmem>>, vector<8x256xf32>
    %15 = vector.extract_strided_slice %14 {offsets = [0, 0], sizes = [1, 128], strides = [1, 1]} : vector<8x256xf32> to vector<1x128xf32>
    %16 = vector.broadcast %15 : vector<1x128xf32> to vector<8x128xf32>
    %17 = arith.addf %13, %16 : vector<8x128xf32>
    %18 = arith.negf %17 : vector<8x128xf32>
    %19 = math.exp %18 : vector<8x128xf32>
    %cst_15 = arith.constant 1.000000e+00 : f32
    %20 = vector.broadcast %cst_15 : f32 to vector<8x128xf32>
    %21 = arith.addf %20, %19 : vector<8x128xf32>
    %22 = arith.divf %20, %21 : vector<8x128xf32>
    %cst_16 = arith.constant 9.99999974E-6 : f32
    %cst_17 = arith.constant 0.999989986 : f32
    %23 = vector.broadcast %cst_16 : f32 to vector<8x128xf32>
    %24 = arith.maximumf %23, %22 : vector<8x128xf32>
    %25 = vector.broadcast %cst_17 : f32 to vector<8x128xf32>
    %26 = arith.minimumf %25, %24 : vector<8x128xf32>
    %27 = arith.truncf %26 : vector<8x128xf32> to vector<8x128xbf16>
    %c0_18 = arith.constant 0 : index
    %c0_19 = arith.constant 0 : index
    %28 = vector.load %arg8[%c0_18, %c0_19] : memref<128x256xbf16, #tpu.memory_space<vmem>>, vector<128x256xbf16>
    %cst_20 = arith.constant dense<0.000000e+00> : vector<8x256xf32>
    %29 = tpu.matmul %27, %28, %cst_20 {dimension_numbers = #tpu.dot_dimension_numbers<[1], [0], [0], [1], [0, 0, 1, 1], [], []>} : vector<8x128xbf16>, vector<128x256xbf16>, vector<8x256xf32> -> vector<8x256xf32>
    %30 = vector.extract_strided_slice %14 {offsets = [1, 0], sizes = [1, 256], strides = [1, 1]} : vector<8x256xf32> to vector<1x256xf32>
    %31 = vector.broadcast %30 : vector<1x256xf32> to vector<8x256xf32>
    %32 = arith.addf %29, %31 : vector<8x256xf32>
    %33 = vector.extract_strided_slice %14 {offsets = [2, 0], sizes = [1, 256], strides = [1, 1]} : vector<8x256xf32> to vector<1x256xf32>
    %34 = vector.extract_strided_slice %14 {offsets = [3, 0], sizes = [1, 256], strides = [1, 1]} : vector<8x256xf32> to vector<1x256xf32>
    %cst_21 = arith.constant dense<0.000000e+00> : vector<8xf32>
    %35 = vector.multi_reduction <add>, %32, %cst_21 [1] : vector<8x256xf32> to vector<8xf32>
    %36 = vector.shape_cast %35 : vector<8xf32> to vector<8x1xf32>
    %cst_22 = arith.constant 2.560000e+02 : f32
    %37 = vector.broadcast %cst_22 : f32 to vector<8x1xf32>
    %38 = arith.divf %36, %37 : vector<8x1xf32>
    %39 = arith.mulf %32, %32 : vector<8x256xf32>
    %cst_23 = arith.constant dense<0.000000e+00> : vector<8xf32>
    %40 = vector.multi_reduction <add>, %39, %cst_23 [1] : vector<8x256xf32> to vector<8xf32>
    %41 = vector.shape_cast %40 : vector<8xf32> to vector<8x1xf32>
    %cst_24 = arith.constant 2.560000e+02 : f32
    %42 = vector.broadcast %cst_24 : f32 to vector<8x1xf32>
    %43 = arith.divf %41, %42 : vector<8x1xf32>
    %44 = arith.mulf %38, %38 : vector<8x1xf32>
    %45 = arith.subf %43, %44 : vector<8x1xf32>
    %cst_25 = arith.constant 9.99999974E-6 : f32
    %46 = vector.broadcast %cst_25 : f32 to vector<8x1xf32>
    %47 = arith.addf %45, %46 : vector<8x1xf32>
    %48 = math.rsqrt %47 : vector<8x1xf32>
    %49 = vector.broadcast %48 : vector<8x1xf32> to vector<8x256xf32>
    %50 = vector.broadcast %33 : vector<1x256xf32> to vector<8x256xf32>
    %51 = arith.mulf %49, %50 : vector<8x256xf32>
    %52 = vector.broadcast %38 : vector<8x1xf32> to vector<8x256xf32>
    %53 = arith.subf %32, %52 : vector<8x256xf32>
    %54 = arith.mulf %53, %51 : vector<8x256xf32>
    %55 = vector.broadcast %34 : vector<1x256xf32> to vector<8x256xf32>
    %56 = arith.addf %54, %55 : vector<8x256xf32>
    %cst_26 = arith.constant 0.000000e+00 : f32
    %57 = vector.broadcast %cst_26 : f32 to vector<8x256xf32>
    %58 = arith.maximumf %56, %57 : vector<8x256xf32>
    %59 = arith.truncf %58 : vector<8x256xf32> to vector<8x256xbf16>
    %c0_27 = arith.constant 0 : index
    %c0_28 = arith.constant 0 : index
    %60 = vector.load %arg9[%c0_27, %c0_28] : memref<256x128xbf16, #tpu.memory_space<vmem>>, vector<256x128xbf16>
    %cst_29 = arith.constant dense<0.000000e+00> : vector<8x128xf32>
    %61 = tpu.matmul %59, %60, %cst_29 {dimension_numbers = #tpu.dot_dimension_numbers<[1], [0], [0], [1], [0, 0, 1, 1], [], []>} : vector<8x256xbf16>, vector<256x128xbf16>, vector<8x128xf32> -> vector<8x128xf32>
    %62 = vector.extract_strided_slice %14 {offsets = [4, 0], sizes = [1, 128], strides = [1, 1]} : vector<8x256xf32> to vector<1x128xf32>
    %63 = vector.broadcast %62 : vector<1x128xf32> to vector<8x128xf32>
    %64 = arith.addf %61, %63 : vector<8x128xf32>
    %65 = vector.extract_strided_slice %14 {offsets = [5, 0], sizes = [1, 128], strides = [1, 1]} : vector<8x256xf32> to vector<1x128xf32>
    %66 = vector.extract_strided_slice %14 {offsets = [6, 0], sizes = [1, 128], strides = [1, 1]} : vector<8x256xf32> to vector<1x128xf32>
    %cst_30 = arith.constant dense<0.000000e+00> : vector<8xf32>
    %67 = vector.multi_reduction <add>, %64, %cst_30 [1] : vector<8x128xf32> to vector<8xf32>
    %68 = vector.shape_cast %67 : vector<8xf32> to vector<8x1xf32>
    %cst_31 = arith.constant 1.280000e+02 : f32
    %69 = vector.broadcast %cst_31 : f32 to vector<8x1xf32>
    %70 = arith.divf %68, %69 : vector<8x1xf32>
    %71 = arith.mulf %64, %64 : vector<8x128xf32>
    %cst_32 = arith.constant dense<0.000000e+00> : vector<8xf32>
    %72 = vector.multi_reduction <add>, %71, %cst_32 [1] : vector<8x128xf32> to vector<8xf32>
    %73 = vector.shape_cast %72 : vector<8xf32> to vector<8x1xf32>
    %cst_33 = arith.constant 1.280000e+02 : f32
    %74 = vector.broadcast %cst_33 : f32 to vector<8x1xf32>
    %75 = arith.divf %73, %74 : vector<8x1xf32>
    %76 = arith.mulf %70, %70 : vector<8x1xf32>
    %77 = arith.subf %75, %76 : vector<8x1xf32>
    %cst_34 = arith.constant 9.99999974E-6 : f32
    %78 = vector.broadcast %cst_34 : f32 to vector<8x1xf32>
    %79 = arith.addf %77, %78 : vector<8x1xf32>
    %80 = math.rsqrt %79 : vector<8x1xf32>
    %81 = vector.broadcast %80 : vector<8x1xf32> to vector<8x128xf32>
    %82 = vector.broadcast %65 : vector<1x128xf32> to vector<8x128xf32>
    %83 = arith.mulf %81, %82 : vector<8x128xf32>
    %84 = vector.broadcast %70 : vector<8x1xf32> to vector<8x128xf32>
    %85 = arith.subf %64, %84 : vector<8x128xf32>
    %86 = arith.mulf %85, %83 : vector<8x128xf32>
    %87 = vector.broadcast %66 : vector<1x128xf32> to vector<8x128xf32>
    %88 = arith.addf %86, %87 : vector<8x128xf32>
    %cst_35 = arith.constant 0.000000e+00 : f32
    %89 = vector.broadcast %cst_35 : f32 to vector<8x128xf32>
    %90 = arith.maximumf %88, %89 : vector<8x128xf32>
    %c8_i32 = arith.constant 8 : i32
    %91 = arith.muli %arg0, %c8_i32 : i32
    %92 = tpu.iota {dimensions = array<i32: 0>} : vector<8x1xi32>
    %93 = vector.broadcast %91 : i32 to vector<8x1xi32>
    %94 = arith.addi %93, %92 : vector<8x1xi32>
    %c0_36 = arith.constant 0 : index
    %95 = memref.load %arg1[%c0_36] : memref<1xi32, #tpu.memory_space<smem>>
    %96 = vector.broadcast %95 : i32 to vector<8x1xi32>
    %97 = arith.cmpi slt, %94, %96 : vector<8x1xi32>
    %98 = vector.extract_strided_slice %14 {offsets = [7, 0], sizes = [1, 128], strides = [1, 1]} : vector<8x256xf32> to vector<1x128xf32>
    %99 = vector.broadcast %98 : vector<1x128xf32> to vector<8x128xf32>
    %100 = arith.mulf %90, %99 : vector<8x128xf32>
    %cst_37 = arith.constant 0.000000e+00 : f32
    %101 = vector.shape_cast %97 : vector<8x1xi1> to vector<8x1xi1>
    %102 = vector.broadcast %101 : vector<8x1xi1> to vector<8x128xi1>
    %103 = vector.broadcast %cst_37 : f32 to vector<8x128xf32>
    %104 = arith.select %102, %100, %103 : vector<8x128xi1>, vector<8x128xf32>
    %105 = vector.shape_cast %104 : vector<8x128xf32> to vector<1x8x128xf32>
    %cst_38 = arith.constant dense<0.000000e+00> : vector<8x128xf32>
    %106 = vector.multi_reduction <add>, %105, %cst_38 [0] : vector<1x8x128xf32> to vector<8x128xf32>
    %c0_39 = arith.constant 0 : index
    %c0_40 = arith.constant 0 : index
    %107 = vector.load %arg11[%c0_39, %c0_40] : memref<8x128xf32, #tpu.memory_space<vmem>>, vector<8x128xf32>
    tpu.vector_store %arg11[%c0_39, %c0_40], %106 {strides = array<i32>} : memref<8x128xf32, #tpu.memory_space<vmem>>, vector<8x128xf32>,
    return
  }
  func.func @transform_0(%arg0: i32, %arg1: memref<1xi32, #tpu.memory_space<smem>>) -> (i32, i32) {
    %c0_i32 = arith.constant 0 : i32
    %c0_i32_0 = arith.constant 0 : i32
    return %arg0, %c0_i32 : i32, i32
  }
  func.func @transform_1(%arg0: i32, %arg1: memref<1xi32, #tpu.memory_space<smem>>) -> (i32, i32) {
    %c0_i32 = arith.constant 0 : i32
    %c0_i32_0 = arith.constant 0 : i32
    return %arg0, %c0_i32 : i32, i32
  }
  func.func @transform_2(%arg0: i32, %arg1: memref<1xi32, #tpu.memory_space<smem>>) -> (i32, i32) {
    %c0_i32 = arith.constant 0 : i32
    %c0_i32_0 = arith.constant 0 : i32
    return %arg0, %c0_i32 : i32, i32
  }
  func.func @transform_3(%arg0: i32, %arg1: memref<1xi32, #tpu.memory_space<smem>>) -> (i32, i32) {
    %c0_i32 = arith.constant 0 : i32
    %c0_i32_0 = arith.constant 0 : i32
    %c0_i32_1 = arith.constant 0 : i32
    return %c0_i32, %c0_i32_0 : i32, i32
  }
  func.func @transform_4(%arg0: i32, %arg1: memref<1xi32, #tpu.memory_space<smem>>) -> (i32, i32) {
    %c0_i32 = arith.constant 0 : i32
    %c0_i32_0 = arith.constant 0 : i32
    %c0_i32_1 = arith.constant 0 : i32
    return %c0_i32, %c0_i32_0 : i32, i32
  }
  func.func @transform_5(%arg0: i32, %arg1: memref<1xi32, #tpu.memory_space<smem>>) -> (i32, i32) {
    %c0_i32 = arith.constant 0 : i32
    %c0_i32_0 = arith.constant 0 : i32
    %c0_i32_1 = arith.constant 0 : i32
    return %c0_i32, %c0_i32_0 : i32, i32
  }
  func.func @transform_6(%arg0: i32, %arg1: memref<1xi32, #tpu.memory_space<smem>>) -> (i32, i32) {
    %c0_i32 = arith.constant 0 : i32
    %c0_i32_0 = arith.constant 0 : i32
    %c0_i32_1 = arith.constant 0 : i32
    return %c0_i32, %c0_i32_0 : i32, i32
  }
  func.func @transform_7(%arg0: i32, %arg1: memref<1xi32, #tpu.memory_space<smem>>) -> (i32, i32) {
    %c0_i32 = arith.constant 0 : i32
    %c0_i32_0 = arith.constant 0 : i32
    %c0_i32_1 = arith.constant 0 : i32
    return %c0_i32, %c0_i32_0 : i32, i32
  }
  func.func @transform_8(%arg0: i32, %arg1: memref<1xi32, #tpu.memory_space<smem>>) -> (i32, i32) {
    %c0_i32 = arith.constant 0 : i32
    %c0_i32_0 = arith.constant 0 : i32
    %c0_i32_1 = arith.constant 0 : i32
    return %c0_i32, %c0_i32_0 : i32, i32
  }
  func.func @transform_9(%arg0: i32, %arg1: memref<1xi32, #tpu.memory_space<smem>>) -> (i32, i32) {
    %c0_i32 = arith.constant 0 : i32
    %c0_i32_0 = arith.constant 0 : i32
    return %arg0, %c0_i32 : i32, i32
  }
}

</mosaic_0001>

<llo_original>
// kernel: tpu_custom_call.1
$region0: #{tpu_custom_call.1}
  #allocation0 [shape = 'u32[]', space=smem, size = 0x4, offset = 0x4, fixed_abs, tag = 'smem constant byte address 0x4 - core index']
  #allocation1 [shape = 'u32[144,128]{1,0:T(1,128)}', space=vmem, size = 0x12000, scoped, tag = 'internal scratch']
  #allocation2 [shape = 's32[1]{0}', space=sflag, size = 0x4, scoped, tag = 'scoped memory for tpu_custom_call.1']
  #allocation3 [shape = 's32[1]{0:T(128)S(6)}', space=smem, size = 0x200, scoped, tag = 'prefetched SMEM operand 0']
  %s0 = inlined_call_operand.<no memory space> [shape: s32[1], index: 0, kind: input, shape index: {}]
  %s1 = inlined_call_operand.hbm [shape: f32[8,32], index: 1, kind: input, shape index: {}]
  %s2 = inlined_call_operand.hbm [shape: f32[8,128], index: 2, kind: input, shape index: {}]
  %s3 = inlined_call_operand.vmem [shape: f32[8,4], index: 3, kind: input, shape index: {}]
  %s4 = inlined_call_operand.vmem [shape: bf16[32,128], index: 4, kind: input, shape index: {}]
  %s5 = inlined_call_operand.hbm [shape: bf16[128,128], index: 5, kind: input, shape index: {}]
  %s6 = inlined_call_operand.vmem [shape: bf16[4,128], index: 6, kind: input, shape index: {}]
  %s7 = inlined_call_operand.hbm [shape: bf16[128,256], index: 7, kind: input, shape index: {}]
  %s8 = inlined_call_operand.hbm [shape: bf16[256,128], index: 8, kind: input, shape index: {}]
  %s9 = inlined_call_operand.vmem [shape: f32[8,256], index: 9, kind: input, shape index: {}]
  %s10 = inlined_call_operand.hbm [shape: f32[8,128], index: 10, kind: output, shape index: {}]
  %s11 = sld [smem:[#allocation0]]
  $region66: #{tpu_custom_call.1} parent=0
    _
  %s13 = ssub.s32 1, %s11
  %s14 = scalar_select 0, %s13, %s11
  %15 = sst [smem:[#allocation3]] %s0
  $region1: #{tpu_custom_call.1} parent=0
    #allocation4 [shape = 'u8[4096]{0}', space=vmem, size = 0x1000, scoped, tag = 'input window, operand 1, single buffered']
    #allocation5 [shape = 's32[1]{0}', space=sflag, size = 0x4, scoped, tag = 'scoped memory for tpu_custom_call.1']
    #allocation6 [shape = 's32[1]{0}', space=sflag, size = 0x4, scoped, tag = 'scoped memory for tpu_custom_call.1']
    #allocation7 [shape = 'u8[4096]{0}', space=vmem, size = 0x1000, scoped, tag = 'input window, operand 2, single buffered']
    #allocation8 [shape = 's32[1]{0}', space=sflag, size = 0x4, scoped, tag = 'scoped memory for tpu_custom_call.1']
    #allocation9 [shape = 'u8[32768]{0}', space=vmem, size = 0x8000, scoped, tag = 'input window, operand 5, single buffered']
    #allocation10 [shape = 'u8[65536]{0}', space=vmem, size = 0x10000, scoped, tag = 'input window, operand 7, single buffered']
    #allocation11 [shape = 's32[1]{0}', space=sflag, size = 0x4, scoped, tag = 'scoped memory for tpu_custom_call.1']
    #allocation12 [shape = 'u8[65536]{0}', space=vmem, size = 0x10000, scoped, tag = 'input window, operand 8, single buffered']
    #allocation13 [shape = 'u8[4096]{0}', space=vmem, size = 0x1000, scoped, tag = 'output window, operand 0, single buffered']
    %16 = vsyncpa [#allocation5], 0
    %17 = vsyncpa [#allocation8], 0
    %18 = vsyncpa [#allocation11], 0
    %19 = vsyncpa [#allocation6], 0
    // Predicated region
    $region2: #{tpu_custom_call.1} parent=1 // pred_check
      _
    $region3: #{tpu_custom_call.1} parent=1 // pred_check_branch
      %21 = sbr.rel (0) target = $region5
    $region4: #{tpu_custom_call.1} parent=1 // pred_region
      %s23 = ssub.s32 128, 128
      %24 = vsyncadd [#allocation5], %s23
      %s26 = sshll.u32 [#allocation4], 4
      %s27 = int_to_ptr.vmem [resolvable:$true] %s26
      %29 = dma.hbm_to_vmem [thread:$0]  %s1, 128, %s27, [#allocation5]
    $region5: #{tpu_custom_call.1} parent=1 // pred_fallthru
      _
    // Predicated region
    $region6: #{tpu_custom_call.1} parent=1 // pred_check
      _
    $region7: #{tpu_custom_call.1} parent=1 // pred_check_branch
      %31 = sbr.rel (0) target = $region9
    $region8: #{tpu_custom_call.1} parent=1 // pred_region
      %s33 = ssub.s32 128, 128
      %34 = vsyncadd [#allocation8], %s33
      %s36 = sshll.u32 [#allocation7], 4
      %s37 = int_to_ptr.vmem [resolvable:$true] %s36
      %39 = dma.hbm_to_vmem [thread:$0]  %s2, 128, %s37, [#allocation8]
    $region9: #{tpu_custom_call.1} parent=1 // pred_fallthru
      _
    // Predicated region
    $region10: #{tpu_custom_call.1} parent=1 // pred_check
      _
    $region11: #{tpu_custom_call.1} parent=1 // pred_check_branch
      %41 = sbr.rel (0) target = $region13
    $region12: #{tpu_custom_call.1} parent=1 // pred_region
      _
    $region13: #{tpu_custom_call.1} parent=1 // pred_fallthru
      _
    // Predicated region
    $region14: #{tpu_custom_call.1} parent=1 // pred_check
      _
    $region15: #{tpu_custom_call.1} parent=1 // pred_check_branch
      %43 = sbr.rel (0) target = $region17
    $region16: #{tpu_custom_call.1} parent=1 // pred_region
      _
    $region17: #{tpu_custom_call.1} parent=1 // pred_fallthru
      _
    // Predicated region
    $region18: #{tpu_custom_call.1} parent=1 // pred_check
      _
    $region19: #{tpu_custom_call.1} parent=1 // pred_check_branch
      %45 = sbr.rel (0) target = $region21
    $region20: #{tpu_custom_call.1} parent=1 // pred_region
      %s47 = ssub.s32 1024, 1024
      %48 = vsyncadd [#allocation8], %s47
      %s49 = sshll.u32 [#allocation9], 4
      %s50 = int_to_ptr.vmem [resolvable:$true] %s49
      %55 = dma.hbm_to_vmem [thread:$0]  %s5, 1024, %s50, [#allocation8], 64, 64, 4
    $region21: #{tpu_custom_call.1} parent=1 // pred_fallthru
      _
    // Predicated region
    $region22: #{tpu_custom_call.1} parent=1 // pred_check
      _
    $region23: #{tpu_custom_call.1} parent=1 // pred_check_branch
      %57 = sbr.rel (0) target = $region25
    $region24: #{tpu_custom_call.1} parent=1 // pred_region
      _
    $region25: #{tpu_custom_call.1} parent=1 // pred_fallthru
      _
    // Predicated region
    $region26: #{tpu_custom_call.1} parent=1 // pred_check
      _
    $region27: #{tpu_custom_call.1} parent=1 // pred_check_branch
      %59 = sbr.rel (0) target = $region29
    $region28: #{tpu_custom_call.1} parent=1 // pred_region
      %s61 = ssub.s32 2048, 2048
      %62 = vsyncadd [#allocation11], %s61
      %s63 = sshll.u32 [#allocation10], 4
      %s64 = int_to_ptr.vmem [resolvable:$true] %s63
      %69 = dma.hbm_to_vmem [thread:$0]  %s7, 2048, %s64, [#allocation11], 128, 128, 8
    $region29: #{tpu_custom_call.1} parent=1 // pred_fallthru
      _
    // Predicated region
    $region30: #{tpu_custom_call.1} parent=1 // pred_check
      _
    $region31: #{tpu_custom_call.1} parent=1 // pred_check_branch
      %71 = sbr.rel (0) target = $region33
    $region32: #{tpu_custom_call.1} parent=1 // pred_region
      %s73 = ssub.s32 2048, 2048
      %74 = vsyncadd [#allocation11], %s73
      %s75 = sshll.u32 [#allocation12], 4
      %s76 = int_to_ptr.vmem [resolvable:$true] %s75
      %81 = dma.hbm_to_vmem [thread:$0]  %s8, 2048, %s76, [#allocation11], 64, 64, 4
    $region33: #{tpu_custom_call.1} parent=1 // pred_fallthru
      _
    // Predicated region
    $region34: #{tpu_custom_call.1} parent=1 // pred_check
      _
    $region35: #{tpu_custom_call.1} parent=1 // pred_check_branch
      %83 = sbr.rel (0) target = $region37
    $region36: #{tpu_custom_call.1} parent=1 // pred_region
      _
    $region37: #{tpu_custom_call.1} parent=1 // pred_fallthru
      _
    // Predicated region
    $region38: #{tpu_custom_call.1} parent=1 // pred_check
      _
    $region39: #{tpu_custom_call.1} parent=1 // pred_check_branch
      %85 = sbr.rel (0) target = $region41
    $region40: #{tpu_custom_call.1} parent=1 // pred_region
      %86 = dma.done [#allocation5], 128
    $region41: #{tpu_custom_call.1} parent=1 // pred_fallthru
      _
    // Predicated region
    $region42: #{tpu_custom_call.1} parent=1 // pred_check
      _
    $region43: #{tpu_custom_call.1} parent=1 // pred_check_branch
      %88 = sbr.rel (0) target = $region45
    $region44: #{tpu_custom_call.1} parent=1 // pred_region
      %89 = dma.done [#allocation8], 128
    $region45: #{tpu_custom_call.1} parent=1 // pred_fallthru
      _
    // Predicated region
    $region46: #{tpu_custom_call.1} parent=1 // pred_check
      _
    $region47: #{tpu_custom_call.1} parent=1 // pred_check_branch
      %91 = sbr.rel (0) target = $region49
    $region48: #{tpu_custom_call.1} parent=1 // pred_region
      %92 = dma.done [#allocation8], 1024
    $region49: #{tpu_custom_call.1} parent=1 // pred_fallthru
      _
    // Predicated region
    $region50: #{tpu_custom_call.1} parent=1 // pred_check
      _
    $region51: #{tpu_custom_call.1} parent=1 // pred_check_branch
      %94 = sbr.rel (0) target = $region53
    $region52: #{tpu_custom_call.1} parent=1 // pred_region
      %95 = dma.done [#allocation11], 2048
    $region53: #{tpu_custom_call.1} parent=1 // pred_fallthru
      _
    // Predicated region
    $region54: #{tpu_custom_call.1} parent=1 // pred_check
      _
    $region55: #{tpu_custom_call.1} parent=1 // pred_check_branch
      %97 = sbr.rel (0) target = $region57
    $region56: #{tpu_custom_call.1} parent=1 // pred_region
      %98 = dma.done [#allocation11], 2048
    $region57: #{tpu_custom_call.1} parent=1 // pred_fallthru
      _
    %v100 = vld [vmem:[#allocation7] sm:$0xff]
    %v101 = vpack.c.bf16 %v100, %v100
    %v102 = vld [vmem:[#allocation9] sm:$0xf]
    %v103 = vld [vmem:[#allocation9 + $0x4] sm:$0xf]
    %v104 = vld [vmem:[#allocation9 + $0x8] sm:$0xf]
    %v105 = vld [vmem:[#allocation9 + $0xc] sm:$0xf]
    %v106 = vld [vmem:[#allocation9 + $0x10] sm:$0xf]
    %v107 = vld [vmem:[#allocation9 + $0x14] sm:$0xf]
    %v108 = vld [vmem:[#allocation9 + $0x18] sm:$0xf]
    %v109 = vld [vmem:[#allocation9 + $0x1c] sm:$0xf]
    %v110 = vld [vmem:[#allocation9 + $0x20] sm:$0xf]
    %v111 = vld [vmem:[#allocation9 + $0x24] sm:$0xf]
    %v112 = vld [vmem:[#allocation9 + $0x28] sm:$0xf]
    %v113 = vld [vmem:[#allocation9 + $0x2c] sm:$0xf]
    %v114 = vld [vmem:[#allocation9 + $0x30] sm:$0xf]
    %v115 = vld [vmem:[#allocation9 + $0x34] sm:$0xf]
    %v116 = vld [vmem:[#allocation9 + $0x38] sm:$0xf]
    %v117 = vld [vmem:[#allocation9 + $0x3c] sm:$0xf]
    %v118 = vld [vmem:[#allocation4] sm:$0xff]
    %v119 = vpack.c.bf16 %v118, %v118
    %v120 = vld [vmem:[%s4] sm:$0xf]
    %v121 = vld [vmem:[%s4 + $0x4] sm:$0xf]
    %v122 = vld [vmem:[%s4 + $0x8] sm:$0xf]
    %v123 = vld [vmem:[%s4 + $0xc] sm:$0xf]
    %v128 = vunpack.c.l.b16 %v120
    %v129 = vunpack.c.l.b16 %v121
    %v130 = vunpack.c.l.b16 %v122
    %v131 = vunpack.c.l.b16 %v123
    %v132 = vpack.c.b16 %v129, %v128
    %v133 = vpack.c.b16 %v131, %v130
    %vm136 = vcmask 261120
    %v138 = vsel %vm136, %v119, 0
    %140 = vmatprep.subr.bf16.mxu0 0
    %141 = vmatpush1.bf16.msra.mxu0 %v132
    %142 = vmatprep.subr.bf16.mxu0 0
    %143 = vmatpush1.bf16.msra.mxu0 %v133
    %144 = vmatprep.subr.bf16.mxu0 0
    %145 = vmatpush1.bf16.msra.mxu0 0
    %146 = vmatprep.subr.bf16.mxu0 0
    %147 = vmatpush1.bf16.msra.mxu0 0
    %148 = vmatprep.subr.bf16.mxu0 0
    %149 = vmatpush1.bf16.msra.mxu0 0
    %150 = vmatprep.subr.bf16.mxu0 0
    %151 = vmatpush1.bf16.msra.mxu0 0
    %152 = vmatprep.subr.bf16.mxu0 0
    %153 = vmatpush1.bf16.msra.mxu0 0
    %154 = vmatprep.subr.bf16.mxu0 0
    %155 = vmatpush1.bf16.msra.mxu0 0
    %156 = vmatprep.subr.bf16.mxu0 0
    %157 = vmatpush1.bf16.msra.mxu0 0
    %158 = vmatprep.subr.bf16.mxu0 0
    %159 = vmatpush1.bf16.msra.mxu0 0
    %160 = vmatprep.subr.bf16.mxu0 0
    %161 = vmatpush1.bf16.msra.mxu0 0
    %162 = vmatprep.subr.bf16.mxu0 0
    %163 = vmatpush1.bf16.msra.mxu0 0
    %164 = vmatprep.subr.bf16.mxu0 0
    %165 = vmatpush1.bf16.msra.mxu0 0
    %166 = vmatprep.subr.bf16.mxu0 0
    %167 = vmatpush1.bf16.msra.mxu0 0
    %168 = vmatprep.subr.bf16.mxu0 0
    %169 = vmatpush1.bf16.msra.mxu0 0
    %170 = vmatprep.subr.bf16.mxu0 0
    %171 = vmatpush1.bf16.msra.mxu0 0
    %172 = vmatprep.mubr.bf16.mxu0 0
    %173 = vmatmul.mubr.bf16.gmra.mrb[0].mxu0 %v138
    %v174 = vpop.f32.mrb[0].mxu0
    %v175 = vadd.f32 0.0, %v174
    %v176 = vpop.f32.mrb[0].mxu0
    %v177 = vpop.f32.mrb[0].mxu0
    %v178 = vpop.f32.mrb[0].mxu0
    %179 = vdwg.mxu0
    %v196 = vunpack.c.l.b16 %v102
    %v197 = vunpack.c.l.b16 %v103
    %v198 = vunpack.c.l.b16 %v104
    %v199 = vunpack.c.l.b16 %v105
    %v200 = vunpack.c.l.b16 %v106
    %v201 = vunpack.c.l.b16 %v107
    %v202 = vunpack.c.l.b16 %v108
    %v203 = vunpack.c.l.b16 %v109
    %v204 = vunpack.c.l.b16 %v110
    %v205 = vunpack.c.l.b16 %v111
    %v206 = vunpack.c.l.b16 %v112
    %v207 = vunpack.c.l.b16 %v113
    %v208 = vunpack.c.l.b16 %v114
    %v209 = vunpack.c.l.b16 %v115
    %v210 = vunpack.c.l.b16 %v116
    %v211 = vunpack.c.l.b16 %v117
    %v212 = vpack.c.b16 %v197, %v196
    %v213 = vpack.c.b16 %v199, %v198
    %v214 = vpack.c.b16 %v201, %v200
    %v215 = vpack.c.b16 %v203, %v202
    %v216 = vpack.c.b16 %v205, %v204
    %v217 = vpack.c.b16 %v207, %v206
    %v218 = vpack.c.b16 %v209, %v208
    %v219 = vpack.c.b16 %v211, %v210
    %228 = vmatprep.subr.bf16.mxu0 0
    %229 = vmatpush1.bf16.msra.mxu0 %v212
    %230 = vmatprep.subr.bf16.mxu0 0
    %231 = vmatpush1.bf16.msra.mxu0 %v213
    %232 = vmatprep.subr.bf16.mxu0 0
    %233 = vmatpush1.bf16.msra.mxu0 %v214
    %234 = vmatprep.subr.bf16.mxu0 0
    %235 = vmatpush1.bf16.msra.mxu0 %v215
    %236 = vmatprep.subr.bf16.mxu0 0
    %237 = vmatpush1.bf16.msra.mxu0 %v216
    %238 = vmatprep.subr.bf16.mxu0 0
    %239 = vmatpush1.bf16.msra.mxu0 %v217
    %240 = vmatprep.subr.bf16.mxu0 0
    %241 = vmatpush1.bf16.msra.mxu0 %v218
    %242 = vmatprep.subr.bf16.mxu0 0
    %243 = vmatpush1.bf16.msra.mxu0 %v219
    %244 = vmatprep.subr.bf16.mxu0 0
    %245 = vmatpush1.bf16.msra.mxu0 0
    %246 = vmatprep.subr.bf16.mxu0 0
    %247 = vmatpush1.bf16.msra.mxu0 0
    %248 = vmatprep.subr.bf16.mxu0 0
    %249 = vmatpush1.bf16.msra.mxu0 0
    %250 = vmatprep.subr.bf16.mxu0 0
    %251 = vmatpush1.bf16.msra.mxu0 0
    %252 = vmatprep.subr.bf16.mxu0 0
    %253 = vmatpush1.bf16.msra.mxu0 0
    %254 = vmatprep.subr.bf16.mxu0 0
    %255 = vmatpush1.bf16.msra.mxu0 0
    %256 = vmatprep.subr.bf16.mxu0 0
    %257 = vmatpush1.bf16.msra.mxu0 0
    %258 = vmatprep.subr.bf16.mxu0 0
    %259 = vmatpush1.bf16.msra.mxu0 0
    %260 = vmatprep.mubr.bf16.mxu0 0
    %261 = vmatmul.mubr.bf16.gmra.mrb[0].mxu0 %v101
    %v262 = vpop.f32.mrb[0].mxu0
    %v263 = vadd.f32 %v175, %v262
    %v264 = vpop.f32.mrb[0].mxu0
    %v265 = vpop.f32.mrb[0].mxu0
    %v266 = vpop.f32.mrb[0].mxu0
    %267 = vdwg.mxu0
    %v268 = vld [vmem:[%s3] sm:$0xff]
    %v269 = vpack.c.bf16 %v268, %v268
    %v270 = vld [vmem:[%s6] sm:$0x3]
    %vm271 = vcmask 31744
    %v273 = vsel %vm271, %v269, 0
    %vm275 = vcmask 1041408
    %v277 = vsel %vm275, %v270, 0
    %279 = vmatprep.subr.bf16.mxu0 0
    %280 = vmatpush1.bf16.msra.mxu0 %v277
    %281 = vmatprep.subr.bf16.mxu0 0
    %282 = vmatpush1.bf16.msra.mxu0 0
    %283 = vmatprep.subr.bf16.mxu0 0
    %284 = vmatpush1.bf16.msra.mxu0 0
    %285 = vmatprep.subr.bf16.mxu0 0
    %286 = vmatpush1.bf16.msra.mxu0 0
    %287 = vmatprep.subr.bf16.mxu0 0
    %288 = vmatpush1.bf16.msra.mxu0 0
    %289 = vmatprep.subr.bf16.mxu0 0
    %290 = vmatpush1.bf16.msra.mxu0 0
    %291 = vmatprep.subr.bf16.mxu0 0
    %292 = vmatpush1.bf16.msra.mxu0 0
    %293 = vmatprep.subr.bf16.mxu0 0
    %294 = vmatpush1.bf16.msra.mxu0 0
    %295 = vmatprep.subr.bf16.mxu0 0
    %296 = vmatpush1.bf16.msra.mxu0 0
    %297 = vmatprep.subr.bf16.mxu0 0
    %298 = vmatpush1.bf16.msra.mxu0 0
    %299 = vmatprep.subr.bf16.mxu0 0
    %300 = vmatpush1.bf16.msra.mxu0 0
    %301 = vmatprep.subr.bf16.mxu0 0
    %302 = vmatpush1.bf16.msra.mxu0 0
    %303 = vmatprep.subr.bf16.mxu0 0
    %304 = vmatpush1.bf16.msra.mxu0 0
    %305 = vmatprep.subr.bf16.mxu0 0
    %306 = vmatpush1.bf16.msra.mxu0 0
    %307 = vmatprep.subr.bf16.mxu0 0
    %308 = vmatpush1.bf16.msra.mxu0 0
    %309 = vmatprep.subr.bf16.mxu0 0
    %310 = vmatpush1.bf16.msra.mxu0 0
    %311 = vmatprep.mubr.bf16.mxu0 0
    %312 = vmatmul.mubr.bf16.gmra.mrb[0].mxu0 %v273
    %v313 = vpop.f32.mrb[0].mxu0
    %v314 = vadd.f32 0.0, %v313
    %v315 = vpop.f32.mrb[0].mxu0
    %v316 = vpop.f32.mrb[0].mxu0
    %v317 = vpop.f32.mrb[0].mxu0
    %318 = vdwg.mxu0
    %v319 = vadd.f32 %v263, %v314
    %v320 = vld [vmem:[%s9] sm:$0xff]
    %v321 = vld [vmem:[%s9 + $0x8] sm:$0xff]
    %v322 = vlaneseq
    %v323 = vshrl.u32 %v322, 7
    %v324 = vsub.s32 0, %v323
    %v325 = vrot.slane %v320, %v324
    %v326 = vadd.f32 %v319, %v325
    %v327 = vxor.u32 %v326, 2147483648
    %v328 = vmul.f32 %v327, 1.442695
    %v329 = vpow.pop %v328
    %v330 = vadd.f32 %v329, 1.0
    %v331 = vrcp.pop %v330
    %v332 = vmul.f32 1.0, %v331
    %v333 = vmax.f32 %v332, 1e-05
    %v334 = vmin.f32 %v333, 0.99999
    %v335 = vpack.c.bf16 %v334, %v334
    %v336 = vld [vmem:[#allocation10] sm:$0xff]
    %v337 = vld [vmem:[#allocation10 + $0x8] sm:$0xff]
    %v338 = vld [vmem:[#allocation10 + $0x10] sm:$0xff]
    %v339 = vld [vmem:[#allocation10 + $0x18] sm:$0xff]
    %v340 = vld [vmem:[#allocation10 + $0x20] sm:$0xff]
    %v341 = vld [vmem:[#allocation10 + $0x28] sm:$0xff]
    %v342 = vld [vmem:[#allocation10 + $0x30] sm:$0xff]
    %v343 = vld [vmem:[#allocation10 + $0x38] sm:$0xff]
    %v344 = vld [vmem:[#allocation10 + $0x40] sm:$0xff]
    %v345 = vld [vmem:[#allocation10 + $0x48] sm:$0xff]
    %v346 = vld [vmem:[#allocation10 + $0x50] sm:$0xff]
    %v347 = vld [vmem:[#allocation10 + $0x58] sm:$0xff]
    %v348 = vld [vmem:[#allocation10 + $0x60] sm:$0xff]
    %v349 = vld [vmem:[#allocation10 + $0x68] sm:$0xff]
    %v350 = vld [vmem:[#allocation10 + $0x70] sm:$0xff]
    %v351 = vld [vmem:[#allocation10 + $0x78] sm:$0xff]
    %v352 = vlaneseq
    %v353 = vshrl.u32 %v352, 7
    %v354 = vsub.s32 1, %v353
    %v355 = vrot.slane %v320, %v354
    %v356 = vlaneseq
    %v357 = vshrl.u32 %v356, 7
    %v358 = vsub.s32 1, %v357
    %v359 = vrot.slane %v321, %v358
    %v376 = vunpack.c.l.b16 %v336
    %v377 = vunpack.c.h.b16 %v336
    %v378 = vunpack.c.l.b16 %v337
    %v379 = vunpack.c.h.b16 %v337
    %v380 = vunpack.c.l.b16 %v338
    %v381 = vunpack.c.h.b16 %v338
    %v382 = vunpack.c.l.b16 %v339
    %v383 = vunpack.c.h.b16 %v339
    %v384 = vunpack.c.l.b16 %v340
    %v385 = vunpack.c.h.b16 %v340
    %v386 = vunpack.c.l.b16 %v341
    %v387 = vunpack.c.h.b16 %v341
    %v388 = vunpack.c.l.b16 %v342
    %v389 = vunpack.c.h.b16 %v342
    %v390 = vunpack.c.l.b16 %v343
    %v391 = vunpack.c.h.b16 %v343
    %v392 = vunpack.c.l.b16 %v344
    %v393 = vunpack.c.h.b16 %v344
    %v394 = vunpack.c.l.b16 %v345
    %v395 = vunpack.c.h.b16 %v345
    %v396 = vunpack.c.l.b16 %v346
    %v397 = vunpack.c.h.b16 %v346
    %v398 = vunpack.c.l.b16 %v347
    %v399 = vunpack.c.h.b16 %v347
    %v400 = vunpack.c.l.b16 %v348
    %v401 = vunpack.c.h.b16 %v348
    %v402 = vunpack.c.l.b16 %v349
    %v403 = vunpack.c.h.b16 %v349
    %v404 = vunpack.c.l.b16 %v350
    %v405 = vunpack.c.h.b16 %v350
    %v406 = vunpack.c.l.b16 %v351
    %v407 = vunpack.c.h.b16 %v351
    %v408 = vpack.c.b16 %v378, %v376
    %v409 = vpack.c.b16 %v379, %v377
    %v410 = vpack.c.b16 %v382, %v380
    %v411 = vpack.c.b16 %v383, %v381
    %v412 = vpack.c.b16 %v386, %v384
    %v413 = vpack.c.b16 %v387, %v385
    %v414 = vpack.c.b16 %v390, %v388
    %v415 = vpack.c.b16 %v391, %v389
    %v416 = vpack.c.b16 %v394, %v392
    %v417 = vpack.c.b16 %v395, %v393
    %v418 = vpack.c.b16 %v398, %v396
    %v419 = vpack.c.b16 %v399, %v397
    %v420 = vpack.c.b16 %v402, %v400
    %v421 = vpack.c.b16 %v403, %v401
    %v422 = vpack.c.b16 %v406, %v404
    %v423 = vpack.c.b16 %v407, %v405
    %440 = vmatprep.subr.bf16.mxu0 %v409
    %441 = vmatpush1.bf16.msra.mxu0 %v408
    %442 = vmatprep.subr.bf16.mxu0 %v411
    %443 = vmatpush1.bf16.msra.mxu0 %v410
    %444 = vmatprep.subr.bf16.mxu0 %v413
    %445 = vmatpush1.bf16.msra.mxu0 %v412
    %446 = vmatprep.subr.bf16.mxu0 %v415
    %447 = vmatpush1.bf16.msra.mxu0 %v414
    %448 = vmatprep.subr.bf16.mxu0 %v417
    %449 = vmatpush1.bf16.msra.mxu0 %v416
    %450 = vmatprep.subr.bf16.mxu0 %v419
    %451 = vmatpush1.bf16.msra.mxu0 %v418
    %452 = vmatprep.subr.bf16.mxu0 %v421
    %453 = vmatpush1.bf16.msra.mxu0 %v420
    %454 = vmatprep.subr.bf16.mxu0 %v423
    %455 = vmatpush1.bf16.msra.mxu0 %v422
    %456 = vmatprep.subr.bf16.mxu0 0
    %457 = vmatpush1.bf16.msra.mxu0 0
    %458 = vmatprep.subr.bf16.mxu0 0
    %459 = vmatpush1.bf16.msra.mxu0 0
    %460 = vmatprep.subr.bf16.mxu0 0
    %461 = vmatpush1.bf16.msra.mxu0 0
    %462 = vmatprep.subr.bf16.mxu0 0
    %463 = vmatpush1.bf16.msra.mxu0 0
    %464 = vmatprep.subr.bf16.mxu0 0
    %465 = vmatpush1.bf16.msra.mxu0 0
    %466 = vmatprep.subr.bf16.mxu0 0
    %467 = vmatpush1.bf16.msra.mxu0 0
    %468 = vmatprep.subr.bf16.mxu0 0
    %469 = vmatpush1.bf16.msra.mxu0 0
    %470 = vmatprep.subr.bf16.mxu0 0
    %471 = vmatpush1.bf16.msra.mxu0 0
    %472 = vmatprep.mubr.bf16.mxu0 0
    %473 = vmatmul.mubr.bf16.gmra.mrb[0].mxu0 %v335
    %v474 = vpop.f32.mrb[0].mxu0
    %v475 = vadd.f32 %v355, %v474
    %v476 = vpop.f32.mrb[0].mxu0
    %v477 = vadd.f32 %v359, %v476
    %v478 = vpop.f32.mrb[0].mxu0
    %v479 = vpop.f32.mrb[0].mxu0
    %480 = vdwg.mxu0
    %v481 = vadd.f32 %v475, %v477
    %482 = vadd.xlane.f32.xlu0 %v481
    %v483 = vpop.xlane.xlu0 %482
    %v484 = vrcp.pop 256.0
    %v485 = vmul.f32 %v483, %v484
    %v486 = vmul.f32 %v475, %v475
    %v487 = vmul.f32 %v477, %v477
    %v488 = vadd.f32 %v486, %v487
    %489 = vadd.xlane.f32.xlu0 %v488
    %v490 = vpop.xlane.xlu0 %489
    %v491 = vmul.f32 %v490, %v484
    %v492 = vmul.f32 %v485, %v485
    %v493 = vsub.f32 %v491, %v492
    %v494 = vadd.f32 %v493, 1e-05
    %v495 = vrsqrt.pop %v494
    %v496 = vlaneseq
    %v497 = vshrl.u32 %v496, 7
    %v498 = vsub.s32 2, %v497
    %v499 = vrot.slane %v320, %v498
    %v500 = vlaneseq
    %v501 = vshrl.u32 %v500, 7
    %v502 = vsub.s32 2, %v501
    %v503 = vrot.slane %v321, %v502
    %v504 = vmul.f32 %v495, %v499
    %v505 = vmul.f32 %v495, %v503
    %v506 = vsub.f32 %v475, %v485
    %v507 = vsub.f32 %v477, %v485
    %v508 = vmul.f32 %v506, %v504
    %v509 = vmul.f32 %v507, %v505
    %v510 = vlaneseq
    %v511 = vshrl.u32 %v510, 7
    %v512 = vsub.s32 3, %v511
    %v513 = vrot.slane %v320, %v512
    %v514 = vlaneseq
    %v515 = vshrl.u32 %v514, 7
    %v516 = vsub.s32 3, %v515
    %v517 = vrot.slane %v321, %v516
    %v518 = vadd.f32 %v508, %v513
    %v519 = vadd.f32 %v509, %v517
    %v520 = vmax.f32 %v518, 0.0
    %v521 = vmax.f32 %v519, 0.0
    %v522 = vpack.c.bf16 %v520, %v520
    %v523 = vpack.c.bf16 %v521, %v521
    %v524 = vld [vmem:[#allocation12] sm:$0xf]
    %v525 = vld [vmem:[#allocation12 + $0x4] sm:$0xf]
    %v526 = vld [vmem:[#allocation12 + $0x8] sm:$0xf]
    %v527 = vld [vmem:[#allocation12 + $0xc] sm:$0xf]
    %v528 = vld [vmem:[#allocation12 + $0x10] sm:$0xf]
    %v529 = vld [vmem:[#allocation12 + $0x14] sm:$0xf]
    %v530 = vld [vmem:[#allocation12 + $0x18] sm:$0xf]
    %v531 = vld [vmem:[#allocation12 + $0x1c] sm:$0xf]
    %v532 = vld [vmem:[#allocation12 + $0x20] sm:$0xf]
    %v533 = vld [vmem:[#allocation12 + $0x24] sm:$0xf]
    %v534 = vld [vmem:[#allocation12 + $0x28] sm:$0xf]
    %v535 = vld [vmem:[#allocation12 + $0x2c] sm:$0xf]
    %v536 = vld [vmem:[#allocation12 + $0x30] sm:$0xf]
    %v537 = vld [vmem:[#allocation12 + $0x34] sm:$0xf]
    %v538 = vld [vmem:[#allocation12 + $0x38] sm:$0xf]
    %v539 = vld [vmem:[#allocation12 + $0x3c] sm:$0xf]
    %v540 = vld [vmem:[#allocation12 + $0x40] sm:$0xf]
    %v541 = vld [vmem:[#allocation12 + $0x44] sm:$0xf]
    %v542 = vld [vmem:[#allocation12 + $0x48] sm:$0xf]
    %v543 = vld [vmem:[#allocation12 + $0x4c] sm:$0xf]
    %v544 = vld [vmem:[#allocation12 + $0x50] sm:$0xf]
    %v545 = vld [vmem:[#allocation12 + $0x54] sm:$0xf]
    %v546 = vld [vmem:[#allocation12 + $0x58] sm:$0xf]
    %v547 = vld [vmem:[#allocation12 + $0x5c] sm:$0xf]
    %v548 = vld [vmem:[#allocation12 + $0x60] sm:$0xf]
    %v549 = vld [vmem:[#allocation12 + $0x64] sm:$0xf]
    %v550 = vld [vmem:[#allocation12 + $0x68] sm:$0xf]
    %v551 = vld [vmem:[#allocation12 + $0x6c] sm:$0xf]
    %v552 = vld [vmem:[#allocation12 + $0x70] sm:$0xf]
    %v553 = vld [vmem:[#allocation12 + $0x74] sm:$0xf]
    %v554 = vld [vmem:[#allocation12 + $0x78] sm:$0xf]
    %v555 = vld [vmem:[#allocation12 + $0x7c] sm:$0xf]
    %v556 = vlaneseq
    %v557 = vshrl.u32 %v556, 7
    %v558 = vsub.s32 4, %v557
    %v559 = vrot.slane %v320, %v558
    %v592 = vunpack.c.l.b16 %v524
    %v593 = vunpack.c.l.b16 %v525
    %v594 = vunpack.c.l.b16 %v526
    %v595 = vunpack.c.l.b16 %v527
    %v596 = vunpack.c.l.b16 %v528
    %v597 = vunpack.c.l.b16 %v529
    %v598 = vunpack.c.l.b16 %v530
    %v599 = vunpack.c.l.b16 %v531
    %v600 = vunpack.c.l.b16 %v532
    %v601 = vunpack.c.l.b16 %v533
    %v602 = vunpack.c.l.b16 %v534
    %v603 = vunpack.c.l.b16 %v535
    %v604 = vunpack.c.l.b16 %v536
    %v605 = vunpack.c.l.b16 %v537
    %v606 = vunpack.c.l.b16 %v538
    %v607 = vunpack.c.l.b16 %v539
    %v608 = vunpack.c.l.b16 %v540
    %v609 = vunpack.c.l.b16 %v541
    %v610 = vunpack.c.l.b16 %v542
    %v611 = vunpack.c.l.b16 %v543
    %v612 = vunpack.c.l.b16 %v544
    %v613 = vunpack.c.l.b16 %v545
    %v614 = vunpack.c.l.b16 %v546
    %v615 = vunpack.c.l.b16 %v547
    %v616 = vunpack.c.l.b16 %v548
    %v617 = vunpack.c.l.b16 %v549
    %v618 = vunpack.c.l.b16 %v550
    %v619 = vunpack.c.l.b16 %v551
    %v620 = vunpack.c.l.b16 %v552
    %v621 = vunpack.c.l.b16 %v553
    %v622 = vunpack.c.l.b16 %v554
    %v623 = vunpack.c.l.b16 %v555
    %v624 = vpack.c.b16 %v593, %v592
    %v625 = vpack.c.b16 %v595, %v594
    %v626 = vpack.c.b16 %v597, %v596
    %v627 = vpack.c.b16 %v599, %v598
    %v628 = vpack.c.b16 %v601, %v600
    %v629 = vpack.c.b16 %v603, %v602
    %v630 = vpack.c.b16 %v605, %v604
    %v631 = vpack.c.b16 %v607, %v606
    %v632 = vpack.c.b16 %v609, %v608
    %v633 = vpack.c.b16 %v611, %v610
    %v634 = vpack.c.b16 %v613, %v612
    %v635 = vpack.c.b16 %v615, %v614
    %v636 = vpack.c.b16 %v617, %v616
    %v637 = vpack.c.b16 %v619, %v618
    %v638 = vpack.c.b16 %v621, %v620
    %v639 = vpack.c.b16 %v623, %v622
    %656 = vmatprep.subr.bf16.mxu0 0
    %657 = vmatpush1.bf16.msra.mxu0 %v624
    %658 = vmatprep.subr.bf16.mxu0 0
    %659 = vmatpush1.bf16.msra.mxu0 %v625
    %660 = vmatprep.subr.bf16.mxu0 0
    %661 = vmatpush1.bf16.msra.mxu0 %v626
    %662 = vmatprep.subr.bf16.mxu0 0
    %663 = vmatpush1.bf16.msra.mxu0 %v627
    %664 = vmatprep.subr.bf16.mxu0 0
    %665 = vmatpush1.bf16.msra.mxu0 %v628
    %666 = vmatprep.subr.bf16.mxu0 0
    %667 = vmatpush1.bf16.msra.mxu0 %v629
    %668 = vmatprep.subr.bf16.mxu0 0
    %669 = vmatpush1.bf16.msra.mxu0 %v630
    %670 = vmatprep.subr.bf16.mxu0 0
    %671 = vmatpush1.bf16.msra.mxu0 %v631
    %672 = vmatprep.subr.bf16.mxu0 0
    %673 = vmatpush1.bf16.msra.mxu0 %v632
    %674 = vmatprep.subr.bf16.mxu0 0
    %675 = vmatpush1.bf16.msra.mxu0 %v633
    %676 = vmatprep.subr.bf16.mxu0 0
    %677 = vmatpush1.bf16.msra.mxu0 %v634
    %678 = vmatprep.subr.bf16.mxu0 0
    %679 = vmatpush1.bf16.msra.mxu0 %v635
    %680 = vmatprep.subr.bf16.mxu0 0
    %681 = vmatpush1.bf16.msra.mxu0 %v636
    %682 = vmatprep.subr.bf16.mxu0 0
    %683 = vmatpush1.bf16.msra.mxu0 %v637
    %684 = vmatprep.subr.bf16.mxu0 0
    %685 = vmatpush1.bf16.msra.mxu0 %v638
    %686 = vmatprep.subr.bf16.mxu0 0
    %687 = vmatpush1.bf16.msra.mxu0 %v639
    %688 = vmatprep.mubr.bf16.mxu0 %v523
    %689 = vmatmul.mubr.bf16.gmra.mrb[0].mxu0 %v522
    %v690 = vpop.f32.mrb[0].mxu0
    %v691 = vadd.f32 %v559, %v690
    %v692 = vpop.f32.mrb[0].mxu0
    %v693 = vpop.f32.mrb[0].mxu0
    %v694 = vpop.f32.mrb[0].mxu0
    %695 = vdwg.mxu0
    %696 = vadd.xlane.f32.xlu0 %v691
    %v697 = vpop.xlane.xlu0 %696
    %v698 = vrcp.pop 128.0
    %v699 = vmul.f32 %v697, %v698
    %v700 = vmul.f32 %v691, %v691
    %701 = vadd.xlane.f32.xlu0 %v700
    %v702 = vpop.xlane.xlu0 %701
    %v703 = vmul.f32 %v702, %v698
    %v704 = vmul.f32 %v699, %v699
    %v705 = vsub.f32 %v703, %v704
    %v706 = vadd.f32 %v705, 1e-05
    %v707 = vrsqrt.pop %v706
    %v708 = vlaneseq
    %v709 = vshrl.u32 %v708, 7
    %v710 = vsub.s32 5, %v709
    %v711 = vrot.slane %v320, %v710
    %v712 = vmul.f32 %v707, %v711
    %v713 = vsub.f32 %v691, %v699
    %v714 = vmul.f32 %v713, %v712
    %v715 = vlaneseq
    %v716 = vshrl.u32 %v715, 7
    %v717 = vsub.s32 6, %v716
    %v718 = vrot.slane %v320, %v717
    %v719 = vadd.f32 %v714, %v718
    %v720 = vmax.f32 %v719, 0.0
    %s721 = smul.u32 0, 8
    %v722 = vlaneseq
    %v723 = vshrl.u32 %v722, 7
    %v724 = vstv %s721
    %v725 = vadd.s32 %v724, %v723
    %s726 = sld [smem:[#allocation3]]
    %v727 = vstv %s726
    %vm728 = vcmp.lt.s32.totalorder %v725, %v727
    %v729 = vlaneseq
    %v730 = vshrl.u32 %v729, 7
    %v731 = vsub.s32 7, %v730
    %v732 = vrot.slane %v320, %v731
    %v733 = vmul.f32 %v720, %v732
    %v734 = vsel %vm728, 1, 0
    %vm735 = vcmp.eq.s32.totalorder %v734, 1
    %v736 = vsel %vm735, %v733, 0.0
    %v737 = vadd.f32 %v736, 0.0
    %738 = vst [vmem:[#allocation13] sm:$0xff] %v737
    // Predicated region
    $region58: #{tpu_custom_call.1} parent=1 // pred_check
      _
    $region59: #{tpu_custom_call.1} parent=1 // pred_check_branch
      %740 = sbr.rel (0) target = $region61
    $region60: #{tpu_custom_call.1} parent=1 // pred_region
      %s742 = ssub.s32 128, 128
      %743 = vsyncadd [#allocation6], %s742
      %s745 = sshll.u32 [#allocation13], 4
      %s746 = int_to_ptr.vmem [resolvable:$true] %s745
      %748 = dma.vmem_to_hbm [thread:$0]  %s746, 128, %s10, [#allocation6]
    $region61: #{tpu_custom_call.1} parent=1 // pred_fallthru
      _
    // Predicated region
    $region62: #{tpu_custom_call.1} parent=1 // pred_check
      _
    $region63: #{tpu_custom_call.1} parent=1 // pred_check_branch
      %750 = sbr.rel (0) target = $region65
    $region64: #{tpu_custom_call.1} parent=1 // pred_region
      %751 = dma.done [#allocation6], 128
    $region65: #{tpu_custom_call.1} parent=1 // pred_fallthru
      _
    %752 = vsyncpa [#allocation5], 1
    %753 = vsyncpa [#allocation8], 1
    %754 = vsyncpa [#allocation11], 1
    %755 = vsyncpa [#allocation6], 1

</llo_original>
